<compile_context>
chip_gen: v6e
topology: v6e:2x2x1
jax: 0.10.0
libtpu: 0.0.40
codegen_flags: <defaults>
</compile_context>

<pallas_src>
import functools

import jax
import jax.numpy as jnp
import numpy as np
from jax import lax
from jax.experimental import pallas as pl
from jax.experimental.pallas import tpu as pltpu


def _conv1x1_pad_add_kernel(x_ref, wb_ref, other_ref, pad1_ref, o_ref, xpad_ref,
                            *, cin, h, w):
    """x_ref:(Cin, H*W)  wb_ref:(Cout, Cin+1)  other/pad1/o_ref:(Cout, Hp*Wp)
    xpad_ref: VMEM scratch (Cin+1, Hp*Wp) — zero-padded x plus a ones row."""
    hp, wp = h + 2, w + 2
    s = hp * wp

    # Initialize scratch: zeros everywhere, except the last row (homogeneous
    # coordinate for the bias) which is 1.0.  Single vectorized store.
    row = lax.broadcasted_iota(jnp.int32, (cin + 1, s), 0)
    xpad_ref[...] = (row == cin).astype(jnp.float32)

    # Copy the H interior image rows into the padded scratch with static lane
    # slices (the 1-pixel border stays zero -> conv border = bias only).
    for r in range(h):
        dst = (r + 1) * wp + 1
        src = r * w
        xpad_ref[0:cin, dst:dst + w] = x_ref[:, src:src + w]

    # MXU: 1x1 conv (+bias via ones row) == channel matmul, lane-dense output.
    z = jnp.dot(wb_ref[...], xpad_ref[...], preferred_element_type=jnp.float32)

    # VPU: single fused store of v3 = conv(x) + other + padding1.
    o_ref[...] = z + other_ref[...] + pad1_ref[...]


def pack_conv_params(w_oihw, b):
    """Pack Conv2d weight (Cout,Cin,1,1) and bias (Cout,) into [W | b] once."""
    cout, cin = w_oihw.shape[0], w_oihw.shape[1]
    return jnp.concatenate([w_oihw.reshape(cout, cin), b.reshape(cout, 1)], axis=1)


@jax.jit
def model_forward(x_nchw, wb, other_nchw, pad1_nchw):
    """Equivalent of Model.forward(x1, other, padding1).
    x_nchw: (1, Cin, H, W); wb: (Cout, Cin+1) packed weight|bias;
    other/padding1: (1, Cout, H+2, W+2)."""
    n, cin, h, w = x_nchw.shape
    cout = wb.shape[0]
    assert n == 1, "kernel written for batch=1 (matches the reference module)"
    assert wb.shape[1] == cin + 1
    hp, wp = h + 2, w + 2
    s = hp * wp

    # Channel-major glue: pure contiguous reshapes (bitcasts), no pads/transposes.
    x2d = x_nchw.reshape(cin, h * w)
    other2d = other_nchw.reshape(cout, s)
    pad12d = pad1_nchw.reshape(cout, s)

    kernel = functools.partial(_conv1x1_pad_add_kernel, cin=cin, h=h, w=w)

    cost = pl.CostEstimate(
        flops=2 * cout * (cin + 1) * s + 2 * cout * s,
        transcendentals=0,
        bytes_accessed=4 * (cin * h * w + cout * (cin + 1) + 3 * cout * s),
    )

    out2d = pl.pallas_call(
        kernel,
        out_shape=jax.ShapeDtypeStruct((cout, s), jnp.float32),
        in_specs=[pl.BlockSpec(memory_space=pltpu.MemorySpace.VMEM)] * 4,
        out_specs=pl.BlockSpec(memory_space=pltpu.MemorySpace.VMEM),
        scratch_shapes=[pltpu.VMEM((cin + 1, s), jnp.float32)],
        cost_estimate=cost,
    )(x2d, wb, other2d, pad12d)

    # Free (row-major) reshape back to NCHW.
    return out2d.reshape(1, cout, hp, wp)


if __name__ == "__main__":
    key = jax.random.PRNGKey(0)
    k_x, k_w, k_b, k_other, k_pad = jax.random.split(key, 5)

    # Small shapes consistent with the module: batch=1, Cin=18, Cout=6, spatial=16.
    N, Cin, Cout, H, W = 1, 18, 6, 16, 16
    PAD = 1
    Hp, Wp = H + 2 * PAD, W + 2 * PAD

    x1 = jax.random.normal(k_x, (N, Cin, H, W), dtype=jnp.float32)
    w_oihw = jax.random.normal(k_w, (Cout, Cin, 1, 1), dtype=jnp.float32) * 0.1
    bias = jax.random.normal(k_b, (Cout,), dtype=jnp.float32) * 0.1
    other = jax.random.normal(k_other, (N, Cout, Hp, Wp), dtype=jnp.float32)
    padding1 = jax.random.normal(k_pad, (N, Cout, Hp, Wp), dtype=jnp.float32)

    # Packed [W | b] is prepared once (would be offline in a real model).
    wb = pack_conv_params(w_oihw, bias)

    out = jax.block_until_ready(model_forward(x1, wb, other, padding1))

    # Pure-JAX reference for sanity.
    v1 = lax.conv_general_dilated(
        x1, w_oihw, window_strides=(1, 1), padding=((PAD, PAD), (PAD, PAD)),
        dimension_numbers=("NCHW", "OIHW", "NCHW"))
    ref = v1 + bias[None, :, None, None] + other + padding1

    assert out.shape == (N, Cout, Hp, Wp), out.shape
    np.testing.assert_allclose(np.asarray(out), np.asarray(ref), atol=1e-4, rtol=1e-4)

    print("KERNEL_OK")
</pallas_src>

<mosaic_0001>
module attributes {stable_mosaic.version = 11 : i64} {
  func.func @_conv1x1_pad_add_kernel(%arg0: memref<18x256xf32, #tpu.memory_space<vmem>>, %arg1: memref<6x19xf32, #tpu.memory_space<vmem>>, %arg2: memref<6x324xf32, #tpu.memory_space<vmem>>, %arg3: memref<6x324xf32, #tpu.memory_space<vmem>>, %arg4: memref<6x324xf32, #tpu.memory_space<vmem>>, %arg5: memref<19x324xf32, #tpu.memory_space<vmem>>) attributes {dimension_semantics = [], scalar_prefetch = 0 : i64, scratch_operands = 1 : i64, tpu.core_type = #tpu.core_type<tc>} {
    %0 = tpu.iota {dimensions = array<i32: 0>} : vector<19x324xi32>
    %c18_i32 = arith.constant 18 : i32
    %1 = vector.broadcast %c18_i32 : i32 to vector<19x324xi32>
    %2 = arith.cmpi eq, %0, %1 : vector<19x324xi32>
    %3 = arith.extui %2 : vector<19x324xi1> to vector<19x324xi32>
    %4 = arith.sitofp %3 : vector<19x324xi32> to vector<19x324xf32>
    %c0 = arith.constant 0 : index
    %c0_0 = arith.constant 0 : index
    %5 = vector.load %arg5[%c0, %c0_0] : memref<19x324xf32, #tpu.memory_space<vmem>>, vector<19x324xf32>
    tpu.vector_store %arg5[%c0, %c0_0], %4 {strides = array<i32>} : memref<19x324xf32, #tpu.memory_space<vmem>>, vector<19x324xf32>,
    %c0_1 = arith.constant 0 : index
    %c0_2 = arith.constant 0 : index
    %6 = vector.load %arg0[%c0_1, %c0_2] : memref<18x256xf32, #tpu.memory_space<vmem>>, vector<18x16xf32>
    %c0_3 = arith.constant 0 : index
    %c19 = arith.constant 19 : index
    %7 = vector.load %arg5[%c0_3, %c19] : memref<19x324xf32, #tpu.memory_space<vmem>>, vector<18x16xf32>
    tpu.vector_store %arg5[%c0_3, %c19], %6 {strides = array<i32>} : memref<19x324xf32, #tpu.memory_space<vmem>>, vector<18x16xf32>,
    %c0_4 = arith.constant 0 : index
    %c16 = arith.constant 16 : index
    %8 = vector.load %arg0[%c0_4, %c16] : memref<18x256xf32, #tpu.memory_space<vmem>>, vector<18x16xf32>
    %c0_5 = arith.constant 0 : index
    %c37 = arith.constant 37 : index
    %9 = vector.load %arg5[%c0_5, %c37] : memref<19x324xf32, #tpu.memory_space<vmem>>, vector<18x16xf32>
    tpu.vector_store %arg5[%c0_5, %c37], %8 {strides = array<i32>} : memref<19x324xf32, #tpu.memory_space<vmem>>, vector<18x16xf32>,
    %c0_6 = arith.constant 0 : index
    %c32 = arith.constant 32 : index
    %10 = vector.load %arg0[%c0_6, %c32] : memref<18x256xf32, #tpu.memory_space<vmem>>, vector<18x16xf32>
    %c0_7 = arith.constant 0 : index
    %c55 = arith.constant 55 : index
    %11 = vector.load %arg5[%c0_7, %c55] : memref<19x324xf32, #tpu.memory_space<vmem>>, vector<18x16xf32>
    tpu.vector_store %arg5[%c0_7, %c55], %10 {strides = array<i32>} : memref<19x324xf32, #tpu.memory_space<vmem>>, vector<18x16xf32>,
    %c0_8 = arith.constant 0 : index
    %c48 = arith.constant 48 : index
    %12 = vector.load %arg0[%c0_8, %c48] : memref<18x256xf32, #tpu.memory_space<vmem>>, vector<18x16xf32>
    %c0_9 = arith.constant 0 : index
    %c73 = arith.constant 73 : index
    %13 = vector.load %arg5[%c0_9, %c73] : memref<19x324xf32, #tpu.memory_space<vmem>>, vector<18x16xf32>
    tpu.vector_store %arg5[%c0_9, %c73], %12 {strides = array<i32>} : memref<19x324xf32, #tpu.memory_space<vmem>>, vector<18x16xf32>,
    %c0_10 = arith.constant 0 : index
    %c64 = arith.constant 64 : index
    %14 = vector.load %arg0[%c0_10, %c64] : memref<18x256xf32, #tpu.memory_space<vmem>>, vector<18x16xf32>
    %c0_11 = arith.constant 0 : index
    %c91 = arith.constant 91 : index
    %15 = vector.load %arg5[%c0_11, %c91] : memref<19x324xf32, #tpu.memory_space<vmem>>, vector<18x16xf32>
    tpu.vector_store %arg5[%c0_11, %c91], %14 {strides = array<i32>} : memref<19x324xf32, #tpu.memory_space<vmem>>, vector<18x16xf32>,
    %c0_12 = arith.constant 0 : index
    %c80 = arith.constant 80 : index
    %16 = vector.load %arg0[%c0_12, %c80] : memref<18x256xf32, #tpu.memory_space<vmem>>, vector<18x16xf32>
    %c0_13 = arith.constant 0 : index
    %c109 = arith.constant 109 : index
    %17 = vector.load %arg5[%c0_13, %c109] : memref<19x324xf32, #tpu.memory_space<vmem>>, vector<18x16xf32>
    tpu.vector_store %arg5[%c0_13, %c109], %16 {strides = array<i32>} : memref<19x324xf32, #tpu.memory_space<vmem>>, vector<18x16xf32>,
    %c0_14 = arith.constant 0 : index
    %c96 = arith.constant 96 : index
    %18 = vector.load %arg0[%c0_14, %c96] : memref<18x256xf32, #tpu.memory_space<vmem>>, vector<18x16xf32>
    %c0_15 = arith.constant 0 : index
    %c127 = arith.constant 127 : index
    %19 = vector.load %arg5[%c0_15, %c127] : memref<19x324xf32, #tpu.memory_space<vmem>>, vector<18x16xf32>
    tpu.vector_store %arg5[%c0_15, %c127], %18 {strides = array<i32>} : memref<19x324xf32, #tpu.memory_space<vmem>>, vector<18x16xf32>,
    %c0_16 = arith.constant 0 : index
    %c112 = arith.constant 112 : index
    %20 = vector.load %arg0[%c0_16, %c112] : memref<18x256xf32, #tpu.memory_space<vmem>>, vector<18x16xf32>
    %c0_17 = arith.constant 0 : index
    %c145 = arith.constant 145 : index
    %21 = vector.load %arg5[%c0_17, %c145] : memref<19x324xf32, #tpu.memory_space<vmem>>, vector<18x16xf32>
    tpu.vector_store %arg5[%c0_17, %c145], %20 {strides = array<i32>} : memref<19x324xf32, #tpu.memory_space<vmem>>, vector<18x16xf32>,
    %c0_18 = arith.constant 0 : index
    %c128 = arith.constant 128 : index
    %22 = vector.load %arg0[%c0_18, %c128] : memref<18x256xf32, #tpu.memory_space<vmem>>, vector<18x16xf32>
    %c0_19 = arith.constant 0 : index
    %c163 = arith.constant 163 : index
    %23 = vector.load %arg5[%c0_19, %c163] : memref<19x324xf32, #tpu.memory_space<vmem>>, vector<18x16xf32>
    tpu.vector_store %arg5[%c0_19, %c163], %22 {strides = array<i32>} : memref<19x324xf32, #tpu.memory_space<vmem>>, vector<18x16xf32>,
    %c0_20 = arith.constant 0 : index
    %c144 = arith.constant 144 : index
    %24 = vector.load %arg0[%c0_20, %c144] : memref<18x256xf32, #tpu.memory_space<vmem>>, vector<18x16xf32>
    %c0_21 = arith.constant 0 : index
    %c181 = arith.constant 181 : index
    %25 = vector.load %arg5[%c0_21, %c181] : memref<19x324xf32, #tpu.memory_space<vmem>>, vector<18x16xf32>
    tpu.vector_store %arg5[%c0_21, %c181], %24 {strides = array<i32>} : memref<19x324xf32, #tpu.memory_space<vmem>>, vector<18x16xf32>,
    %c0_22 = arith.constant 0 : index
    %c160 = arith.constant 160 : index
    %26 = vector.load %arg0[%c0_22, %c160] : memref<18x256xf32, #tpu.memory_space<vmem>>, vector<18x16xf32>
    %c0_23 = arith.constant 0 : index
    %c199 = arith.constant 199 : index
    %27 = vector.load %arg5[%c0_23, %c199] : memref<19x324xf32, #tpu.memory_space<vmem>>, vector<18x16xf32>
    tpu.vector_store %arg5[%c0_23, %c199], %26 {strides = array<i32>} : memref<19x324xf32, #tpu.memory_space<vmem>>, vector<18x16xf32>,
    %c0_24 = arith.constant 0 : index
    %c176 = arith.constant 176 : index
    %28 = vector.load %arg0[%c0_24, %c176] : memref<18x256xf32, #tpu.memory_space<vmem>>, vector<18x16xf32>
    %c0_25 = arith.constant 0 : index
    %c217 = arith.constant 217 : index
    %29 = vector.load %arg5[%c0_25, %c217] : memref<19x324xf32, #tpu.memory_space<vmem>>, vector<18x16xf32>
    tpu.vector_store %arg5[%c0_25, %c217], %28 {strides = array<i32>} : memref<19x324xf32, #tpu.memory_space<vmem>>, vector<18x16xf32>,
    %c0_26 = arith.constant 0 : index
    %c192 = arith.constant 192 : index
    %30 = vector.load %arg0[%c0_26, %c192] : memref<18x256xf32, #tpu.memory_space<vmem>>, vector<18x16xf32>
    %c0_27 = arith.constant 0 : index
    %c235 = arith.constant 235 : index
    %31 = vector.load %arg5[%c0_27, %c235] : memref<19x324xf32, #tpu.memory_space<vmem>>, vector<18x16xf32>
    tpu.vector_store %arg5[%c0_27, %c235], %30 {strides = array<i32>} : memref<19x324xf32, #tpu.memory_space<vmem>>, vector<18x16xf32>,
    %c0_28 = arith.constant 0 : index
    %c208 = arith.constant 208 : index
    %32 = vector.load %arg0[%c0_28, %c208] : memref<18x256xf32, #tpu.memory_space<vmem>>, vector<18x16xf32>
    %c0_29 = arith.constant 0 : index
    %c253 = arith.constant 253 : index
    %33 = vector.load %arg5[%c0_29, %c253] : memref<19x324xf32, #tpu.memory_space<vmem>>, vector<18x16xf32>
    tpu.vector_store %arg5[%c0_29, %c253], %32 {strides = array<i32>} : memref<19x324xf32, #tpu.memory_space<vmem>>, vector<18x16xf32>,
    %c0_30 = arith.constant 0 : index
    %c224 = arith.constant 224 : index
    %34 = vector.load %arg0[%c0_30, %c224] : memref<18x256xf32, #tpu.memory_space<vmem>>, vector<18x16xf32>
    %c0_31 = arith.constant 0 : index
    %c271 = arith.constant 271 : index
    %35 = vector.load %arg5[%c0_31, %c271] : memref<19x324xf32, #tpu.memory_space<vmem>>, vector<18x16xf32>
    tpu.vector_store %arg5[%c0_31, %c271], %34 {strides = array<i32>} : memref<19x324xf32, #tpu.memory_space<vmem>>, vector<18x16xf32>,
    %c0_32 = arith.constant 0 : index
    %c240 = arith.constant 240 : index
    %36 = vector.load %arg0[%c0_32, %c240] : memref<18x256xf32, #tpu.memory_space<vmem>>, vector<18x16xf32>
    %c0_33 = arith.constant 0 : index
    %c289 = arith.constant 289 : index
    %37 = vector.load %arg5[%c0_33, %c289] : memref<19x324xf32, #tpu.memory_space<vmem>>, vector<18x16xf32>
    tpu.vector_store %arg5[%c0_33, %c289], %36 {strides = array<i32>} : memref<19x324xf32, #tpu.memory_space<vmem>>, vector<18x16xf32>,
    %c0_34 = arith.constant 0 : index
    %c0_35 = arith.constant 0 : index
    %38 = vector.load %arg1[%c0_34, %c0_35] : memref<6x19xf32, #tpu.memory_space<vmem>>, vector<6x19xf32>
    %c0_36 = arith.constant 0 : index
    %c0_37 = arith.constant 0 : index
    %39 = vector.load %arg5[%c0_36, %c0_37] : memref<19x324xf32, #tpu.memory_space<vmem>>, vector<19x324xf32>
    %cst = arith.constant dense<0.000000e+00> : vector<6x324xf32>
    %40 = tpu.matmul %38, %39, %cst {dimension_numbers = #tpu.dot_dimension_numbers<[1], [0], [0], [1], [0, 0, 1, 1], [], []>} : vector<6x19xf32>, vector<19x324xf32>, vector<6x324xf32> -> vector<6x324xf32>
    %c0_38 = arith.constant 0 : index
    %c0_39 = arith.constant 0 : index
    %41 = vector.load %arg2[%c0_38, %c0_39] : memref<6x324xf32, #tpu.memory_space<vmem>>, vector<6x324xf32>
    %42 = arith.addf %40, %41 : vector<6x324xf32>
    %c0_40 = arith.constant 0 : index
    %c0_41 = arith.constant 0 : index
    %43 = vector.load %arg3[%c0_40, %c0_41] : memref<6x324xf32, #tpu.memory_space<vmem>>, vector<6x324xf32>
    %44 = arith.addf %42, %43 : vector<6x324xf32>
    %c0_42 = arith.constant 0 : index
    %c0_43 = arith.constant 0 : index
    %45 = vector.load %arg4[%c0_42, %c0_43] : memref<6x324xf32, #tpu.memory_space<vmem>>, vector<6x324xf32>
    tpu.vector_store %arg4[%c0_42, %c0_43], %44 {strides = array<i32>} : memref<6x324xf32, #tpu.memory_space<vmem>>, vector<6x324xf32>,
    return
  }
}

</mosaic_0001>

<llo_original>
// kernel: model_forward.1
$region0: #{model_forward.1}
  #allocation0 [shape = 'u32[]', space=smem, size = 0x4, offset = 0x4, fixed_abs, tag = 'smem constant byte address 0x4 - core index']
  #allocation1 [shape = 'u32[144,128]{1,0:T(1,128)}', space=vmem, size = 0x12000, scoped, tag = 'internal scratch']
  #allocation2 [shape = 'f32[19,324]{1,0:T(8,128)}', space=vmem, size = 0x9000, scoped, tag = 'scratch operand']
  %s0 = inlined_call_operand.vmem [shape: f32[18,256], index: 0, kind: input, shape index: {}]
  %s1 = inlined_call_operand.vmem [shape: f32[6,19], index: 1, kind: input, shape index: {}]
  %s2 = inlined_call_operand.vmem [shape: f32[6,324], index: 2, kind: input, shape index: {}]
  %s3 = inlined_call_operand.vmem [shape: f32[6,324], index: 3, kind: input, shape index: {}]
  %s4 = inlined_call_operand.vmem [shape: f32[6,324], index: 4, kind: output, shape index: {}]
  %s5 = sld [smem:[#allocation0]]
  $region26: #{model_forward.1} parent=0
    _
  %s7 = ssub.s32 1, %s5
  %s8 = scalar_select 0, %s7, %s5
  // Predicated region
  $region2: #{model_forward.1} parent=0 // pred_check
    _
  $region3: #{model_forward.1} parent=0 // pred_check_branch
    %10 = sbr.rel (0) target = $region5
  $region4: #{model_forward.1} parent=0 // pred_region
    _
  $region5: #{model_forward.1} parent=0 // pred_fallthru
    _
  // Predicated region
  $region6: #{model_forward.1} parent=0 // pred_check
    _
  $region7: #{model_forward.1} parent=0 // pred_check_branch
    %12 = sbr.rel (0) target = $region9
  $region8: #{model_forward.1} parent=0 // pred_region
    _
  $region9: #{model_forward.1} parent=0 // pred_fallthru
    _
  // Predicated region
  $region10: #{model_forward.1} parent=0 // pred_check
    _
  $region11: #{model_forward.1} parent=0 // pred_check_branch
    %14 = sbr.rel (0) target = $region13
  $region12: #{model_forward.1} parent=0 // pred_region
    _
  $region13: #{model_forward.1} parent=0 // pred_fallthru
    _
  // Predicated region
  $region14: #{model_forward.1} parent=0 // pred_check
    _
  $region15: #{model_forward.1} parent=0 // pred_check_branch
    %16 = sbr.rel (0) target = $region17
  $region16: #{model_forward.1} parent=0 // pred_region
    _
  $region17: #{model_forward.1} parent=0 // pred_fallthru
    _
  %v17 = vlaneseq
  %v18 = vshrl.u32 %v17, 7
  %v19 = vadd.s32 %v18, 8
  %v20 = vadd.s32 %v18, 16
  %vm21 = vcmp.eq.s32.totalorder %v18, 18
  %vm22 = vcmp.eq.s32.totalorder %v19, 18
  %vm23 = vcmp.eq.s32.totalorder %v20, 18
  %v24 = vsel %vm21, 1, 0
  %v25 = vsel %vm22, 1, 0
  %v26 = vsel %vm23, 1, 0
  %v27 = vcvt.s32.f32 %v24
  %v28 = vcvt.s32.f32 %v25
  %v29 = vcvt.s32.f32 %v26
  %30 = vst [vmem:[#allocation2] sm:$0xff] %v27
  %31 = vst [vmem:[#allocation2 + $0x8] sm:$0xff] %v27
  %vm32 = vcmask 556032
  %33 = vst.msk [vmem:[#allocation2 + $0x10] sm:$0xff] %vm32, %v27
  %34 = vst [vmem:[#allocation2 + $0x18] sm:$0xff] %v28
  %35 = vst [vmem:[#allocation2 + $0x20] sm:$0xff] %v28
  %36 = vst.msk [vmem:[#allocation2 + $0x28] sm:$0xff] %vm32, %v28
  %37 = vst [vmem:[#allocation2 + $0x30] sm:$0x7] %v29
  %38 = vst [vmem:[#allocation2 + $0x38] sm:$0x7] %v29
  %vm39 = vcmask 550912
  %40 = vst.msk [vmem:[#allocation2 + $0x40] sm:$0x7] %vm39, %v29
  %v41 = vld [vmem:[%s0] sm:$0xff]
  %v42 = vld [vmem:[%s0 + $0x10] sm:$0xff]
  %v43 = vld [vmem:[%s0 + $0x20] sm:$0x3]
  %47 = vrot.lane.b32.xlu0 %v41, 19
  %v48 = vpop.permute.xlu0 %47
  %49 = vrot.lane.b32.xlu0 %v42, 19
  %v50 = vpop.permute.xlu0 %49
  %51 = vrot.lane.b32.xlu0 %v43, 19
  %v52 = vpop.permute.xlu0 %51
  %vm56 = vcmask 285848
  %57 = vst.msk [vmem:[#allocation2] sm:$0xff] %vm56, %v48
  %58 = vst.msk [vmem:[#allocation2 + $0x18] sm:$0xff] %vm56, %v50
  %vm59 = vcmask 279704
  %60 = vst.msk [vmem:[#allocation2 + $0x30] sm:$0x3] %vm59, %v52
  %v61 = vld [vmem:[%s0] sm:$0xff]
  %v62 = vld [vmem:[%s0 + $0x10] sm:$0xff]
  %v63 = vld [vmem:[%s0 + $0x20] sm:$0x3]
  %67 = vrot.lane.b32.xlu0 %v61, 21
  %v68 = vpop.permute.xlu0 %67
  %69 = vrot.lane.b32.xlu0 %v62, 21
  %v70 = vpop.permute.xlu0 %69
  %71 = vrot.lane.b32.xlu0 %v63, 21
  %v72 = vpop.permute.xlu0 %71
  %vm76 = vcmask 433448
  %77 = vst.msk [vmem:[#allocation2] sm:$0xff] %vm76, %v68
  %78 = vst.msk [vmem:[#allocation2 + $0x18] sm:$0xff] %vm76, %v70
  %vm79 = vcmask 427304
  %80 = vst.msk [vmem:[#allocation2 + $0x30] sm:$0x3] %vm79, %v72
  %v81 = vld [vmem:[%s0] sm:$0xff]
  %v82 = vld [vmem:[%s0 + $0x10] sm:$0xff]
  %v83 = vld [vmem:[%s0 + $0x20] sm:$0x3]
  %87 = vrot.lane.b32.xlu0 %v81, 23
  %v88 = vpop.permute.xlu0 %87
  %89 = vrot.lane.b32.xlu0 %v82, 23
  %v90 = vpop.permute.xlu0 %89
  %91 = vrot.lane.b32.xlu0 %v83, 23
  %v92 = vpop.permute.xlu0 %91
  %vm96 = vcmask 581048
  %97 = vst.msk [vmem:[#allocation2] sm:$0xff] %vm96, %v88
  %98 = vst.msk [vmem:[#allocation2 + $0x18] sm:$0xff] %vm96, %v90
  %vm99 = vcmask 574904
  %100 = vst.msk [vmem:[#allocation2 + $0x30] sm:$0x3] %vm99, %v92
  %v101 = vld [vmem:[%s0] sm:$0xff]
  %v102 = vld [vmem:[%s0 + $0x10] sm:$0xff]
  %v103 = vld [vmem:[%s0 + $0x20] sm:$0x3]
  %107 = vrot.lane.b32.xlu0 %v101, 25
  %v108 = vpop.permute.xlu0 %107
  %109 = vrot.lane.b32.xlu0 %v102, 25
  %v110 = vpop.permute.xlu0 %109
  %111 = vrot.lane.b32.xlu0 %v103, 25
  %v112 = vpop.permute.xlu0 %111
  %vm116 = vcmask 728648
  %117 = vst.msk [vmem:[#allocation2] sm:$0xff] %vm116, %v108
  %118 = vst.msk [vmem:[#allocation2 + $0x18] sm:$0xff] %vm116, %v110
  %vm119 = vcmask 722504
  %120 = vst.msk [vmem:[#allocation2 + $0x30] sm:$0x3] %vm119, %v112
  %v121 = vld [vmem:[%s0] sm:$0xff]
  %v122 = vld [vmem:[%s0 + $0x10] sm:$0xff]
  %v123 = vld [vmem:[%s0 + $0x20] sm:$0x3]
  %127 = vrot.lane.b32.xlu0 %v121, 27
  %v128 = vpop.permute.xlu0 %127
  %129 = vrot.lane.b32.xlu0 %v122, 27
  %v130 = vpop.permute.xlu0 %129
  %131 = vrot.lane.b32.xlu0 %v123, 27
  %v132 = vpop.permute.xlu0 %131
  %vm136 = vcmask 876248
  %137 = vst.msk [vmem:[#allocation2] sm:$0xff] %vm136, %v128
  %138 = vst.msk [vmem:[#allocation2 + $0x18] sm:$0xff] %vm136, %v130
  %vm139 = vcmask 870104
  %140 = vst.msk [vmem:[#allocation2 + $0x30] sm:$0x3] %vm139, %v132
  %v141 = vld [vmem:[%s0] sm:$0xff]
  %v142 = vld [vmem:[%s0 + $0x10] sm:$0xff]
  %v143 = vld [vmem:[%s0 + $0x20] sm:$0x3]
  %147 = vrot.lane.b32.xlu0 %v141, 29
  %v148 = vpop.permute.xlu0 %147
  %149 = vrot.lane.b32.xlu0 %v142, 29
  %v150 = vpop.permute.xlu0 %149
  %151 = vrot.lane.b32.xlu0 %v143, 29
  %v152 = vpop.permute.xlu0 %151
  %vm156 = vcmask 1023848
  %157 = vst.msk [vmem:[#allocation2] sm:$0xff] %vm156, %v148
  %158 = vst.msk [vmem:[#allocation2 + $0x18] sm:$0xff] %vm156, %v150
  %vm159 = vcmask 1017704
  %160 = vst.msk [vmem:[#allocation2 + $0x30] sm:$0x3] %vm159, %v152
  %v161 = vld [vmem:[%s0] sm:$0xff]
  %v162 = vld [vmem:[%s0 + $0x10] sm:$0xff]
  %v163 = vld [vmem:[%s0 + $0x20] sm:$0x3]
  %167 = vrot.lane.b32.xlu0 %v161, 31
  %v168 = vpop.permute.xlu0 %167
  %169 = vrot.lane.b32.xlu0 %v162, 31
  %v170 = vpop.permute.xlu0 %169
  %171 = vrot.lane.b32.xlu0 %v163, 31
  %v172 = vpop.permute.xlu0 %171
  %vm176 = vcmask 1048568
  %177 = vst.msk [vmem:[#allocation2] sm:$0xff] %vm176, %v168
  %vm178 = vcmask 121856
  %179 = vst.msk [vmem:[#allocation2 + $0x8] sm:$0xff] %vm178, %v168
  %180 = vst.msk [vmem:[#allocation2 + $0x18] sm:$0xff] %vm176, %v170
  %181 = vst.msk [vmem:[#allocation2 + $0x20] sm:$0xff] %vm178, %v170
  %vm182 = vcmask 1042424
  %183 = vst.msk [vmem:[#allocation2 + $0x30] sm:$0x3] %vm182, %v172
  %vm184 = vcmask 115712
  %185 = vst.msk [vmem:[#allocation2 + $0x38] sm:$0x3] %vm184, %v172
  %v186 = vld [vmem:[%s0] sm:$0xff]
  %v187 = vld [vmem:[%s0 + $0x10] sm:$0xff]
  %v188 = vld [vmem:[%s0 + $0x20] sm:$0x3]
  %192 = vrot.lane.b32.xlu0 %v186, 33
  %v193 = vpop.permute.xlu0 %192
  %194 = vrot.lane.b32.xlu0 %v187, 33
  %v195 = vpop.permute.xlu0 %194
  %196 = vrot.lane.b32.xlu0 %v188, 33
  %v197 = vpop.permute.xlu0 %196
  %vm201 = vcmask 269448
  %202 = vst.msk [vmem:[#allocation2 + $0x8] sm:$0xff] %vm201, %v193
  %203 = vst.msk [vmem:[#allocation2 + $0x20] sm:$0xff] %vm201, %v195
  %vm204 = vcmask 263304
  %205 = vst.msk [vmem:[#allocation2 + $0x38] sm:$0x3] %vm204, %v197
  %v206 = vld [vmem:[%s0 + $0x8] sm:$0xff]
  %v207 = vld [vmem:[%s0 + $0x18] sm:$0xff]
  %v208 = vld [vmem:[%s0 + $0x28] sm:$0x3]
  %212 = vrot.lane.b32.xlu0 %v206, 35
  %v213 = vpop.permute.xlu0 %212
  %214 = vrot.lane.b32.xlu0 %v207, 35
  %v215 = vpop.permute.xlu0 %214
  %216 = vrot.lane.b32.xlu0 %v208, 35
  %v217 = vpop.permute.xlu0 %216
  %vm221 = vcmask 417048
  %222 = vst.msk [vmem:[#allocation2 + $0x8] sm:$0xff] %vm221, %v213
  %223 = vst.msk [vmem:[#allocation2 + $0x20] sm:$0xff] %vm221, %v215
  %vm224 = vcmask 410904
  %225 = vst.msk [vmem:[#allocation2 + $0x38] sm:$0x3] %vm224, %v217
  %v226 = vld [vmem:[%s0 + $0x8] sm:$0xff]
  %v227 = vld [vmem:[%s0 + $0x18] sm:$0xff]
  %v228 = vld [vmem:[%s0 + $0x28] sm:$0x3]
  %232 = vrot.lane.b32.xlu0 %v226, 37
  %v233 = vpop.permute.xlu0 %232
  %234 = vrot.lane.b32.xlu0 %v227, 37
  %v235 = vpop.permute.xlu0 %234
  %236 = vrot.lane.b32.xlu0 %v228, 37
  %v237 = vpop.permute.xlu0 %236
  %vm241 = vcmask 564648
  %242 = vst.msk [vmem:[#allocation2 + $0x8] sm:$0xff] %vm241, %v233
  %243 = vst.msk [vmem:[#allocation2 + $0x20] sm:$0xff] %vm241, %v235
  %vm244 = vcmask 558504
  %245 = vst.msk [vmem:[#allocation2 + $0x38] sm:$0x3] %vm244, %v237
  %v246 = vld [vmem:[%s0 + $0x8] sm:$0xff]
  %v247 = vld [vmem:[%s0 + $0x18] sm:$0xff]
  %v248 = vld [vmem:[%s0 + $0x28] sm:$0x3]
  %252 = vrot.lane.b32.xlu0 %v246, 39
  %v253 = vpop.permute.xlu0 %252
  %254 = vrot.lane.b32.xlu0 %v247, 39
  %v255 = vpop.permute.xlu0 %254
  %256 = vrot.lane.b32.xlu0 %v248, 39
  %v257 = vpop.permute.xlu0 %256
  %vm261 = vcmask 712248
  %262 = vst.msk [vmem:[#allocation2 + $0x8] sm:$0xff] %vm261, %v253
  %263 = vst.msk [vmem:[#allocation2 + $0x20] sm:$0xff] %vm261, %v255
  %vm264 = vcmask 706104
  %265 = vst.msk [vmem:[#allocation2 + $0x38] sm:$0x3] %vm264, %v257
  %v266 = vld [vmem:[%s0 + $0x8] sm:$0xff]
  %v267 = vld [vmem:[%s0 + $0x18] sm:$0xff]
  %v268 = vld [vmem:[%s0 + $0x28] sm:$0x3]
  %272 = vrot.lane.b32.xlu0 %v266, 41
  %v273 = vpop.permute.xlu0 %272
  %274 = vrot.lane.b32.xlu0 %v267, 41
  %v275 = vpop.permute.xlu0 %274
  %276 = vrot.lane.b32.xlu0 %v268, 41
  %v277 = vpop.permute.xlu0 %276
  %vm281 = vcmask 859848
  %282 = vst.msk [vmem:[#allocation2 + $0x8] sm:$0xff] %vm281, %v273
  %283 = vst.msk [vmem:[#allocation2 + $0x20] sm:$0xff] %vm281, %v275
  %vm284 = vcmask 853704
  %285 = vst.msk [vmem:[#allocation2 + $0x38] sm:$0x3] %vm284, %v277
  %v286 = vld [vmem:[%s0 + $0x8] sm:$0xff]
  %v287 = vld [vmem:[%s0 + $0x18] sm:$0xff]
  %v288 = vld [vmem:[%s0 + $0x28] sm:$0x3]
  %292 = vrot.lane.b32.xlu0 %v286, 43
  %v293 = vpop.permute.xlu0 %292
  %294 = vrot.lane.b32.xlu0 %v287, 43
  %v295 = vpop.permute.xlu0 %294
  %296 = vrot.lane.b32.xlu0 %v288, 43
  %v297 = vpop.permute.xlu0 %296
  %vm301 = vcmask 1007448
  %302 = vst.msk [vmem:[#allocation2 + $0x8] sm:$0xff] %vm301, %v293
  %303 = vst.msk [vmem:[#allocation2 + $0x20] sm:$0xff] %vm301, %v295
  %vm304 = vcmask 1001304
  %305 = vst.msk [vmem:[#allocation2 + $0x38] sm:$0x3] %vm304, %v297
  %v306 = vld [vmem:[%s0 + $0x8] sm:$0xff]
  %v307 = vld [vmem:[%s0 + $0x18] sm:$0xff]
  %v308 = vld [vmem:[%s0 + $0x28] sm:$0x3]
  %312 = vrot.lane.b32.xlu0 %v306, 45
  %v313 = vpop.permute.xlu0 %312
  %314 = vrot.lane.b32.xlu0 %v307, 45
  %v315 = vpop.permute.xlu0 %314
  %316 = vrot.lane.b32.xlu0 %v308, 45
  %v317 = vpop.permute.xlu0 %316
  %vm321 = vcmask 1048552
  %322 = vst.msk [vmem:[#allocation2 + $0x8] sm:$0xff] %vm321, %v313
  %vm323 = vcmask 105472
  %324 = vst.msk [vmem:[#allocation2 + $0x10] sm:$0xff] %vm323, %v313
  %325 = vst.msk [vmem:[#allocation2 + $0x20] sm:$0xff] %vm321, %v315
  %326 = vst.msk [vmem:[#allocation2 + $0x28] sm:$0xff] %vm323, %v315
  %vm327 = vcmask 1042408
  %328 = vst.msk [vmem:[#allocation2 + $0x38] sm:$0x3] %vm327, %v317
  %vm329 = vcmask 99328
  %330 = vst.msk [vmem:[#allocation2 + $0x40] sm:$0x3] %vm329, %v317
  %v331 = vld [vmem:[%s0 + $0x8] sm:$0xff]
  %v332 = vld [vmem:[%s0 + $0x18] sm:$0xff]
  %v333 = vld [vmem:[%s0 + $0x28] sm:$0x3]
  %337 = vrot.lane.b32.xlu0 %v331, 47
  %v338 = vpop.permute.xlu0 %337
  %339 = vrot.lane.b32.xlu0 %v332, 47
  %v340 = vpop.permute.xlu0 %339
  %341 = vrot.lane.b32.xlu0 %v333, 47
  %v342 = vpop.permute.xlu0 %341
  %vm346 = vcmask 253048
  %347 = vst.msk [vmem:[#allocation2 + $0x10] sm:$0xff] %vm346, %v338
  %348 = vst.msk [vmem:[#allocation2 + $0x28] sm:$0xff] %vm346, %v340
  %vm349 = vcmask 246904
  %350 = vst.msk [vmem:[#allocation2 + $0x40] sm:$0x3] %vm349, %v342
  %v351 = vld [vmem:[%s0 + $0x8] sm:$0xff]
  %v352 = vld [vmem:[%s0 + $0x18] sm:$0xff]
  %v353 = vld [vmem:[%s0 + $0x28] sm:$0x3]
  %357 = vrot.lane.b32.xlu0 %v351, 49
  %v358 = vpop.permute.xlu0 %357
  %359 = vrot.lane.b32.xlu0 %v352, 49
  %v360 = vpop.permute.xlu0 %359
  %361 = vrot.lane.b32.xlu0 %v353, 49
  %v362 = vpop.permute.xlu0 %361
  %vm366 = vcmask 400648
  %367 = vst.msk [vmem:[#allocation2 + $0x10] sm:$0xff] %vm366, %v358
  %368 = vst.msk [vmem:[#allocation2 + $0x28] sm:$0xff] %vm366, %v360
  %vm369 = vcmask 394504
  %370 = vst.msk [vmem:[#allocation2 + $0x40] sm:$0x3] %vm369, %v362
  %v371 = vld [vmem:[%s1] sm:$0x3f]
  %v372 = vld [vmem:[#allocation2] sm:$0xff]
  %v373 = vld [vmem:[#allocation2 + $0x8] sm:$0xff]
  %v374 = vld [vmem:[#allocation2 + $0x10] sm:$0xff]
  %v375 = vld [vmem:[#allocation2 + $0x18] sm:$0xff]
  %v376 = vld [vmem:[#allocation2 + $0x20] sm:$0xff]
  %v377 = vld [vmem:[#allocation2 + $0x28] sm:$0xff]
  %v378 = vld [vmem:[#allocation2 + $0x30] sm:$0x7]
  %v379 = vld [vmem:[#allocation2 + $0x38] sm:$0x7]
  %v380 = vld [vmem:[#allocation2 + $0x40] sm:$0x7]
  %v381 = vld [vmem:[%s2] sm:$0x3f]
  %v382 = vld [vmem:[%s2 + $0x8] sm:$0x3f]
  %v383 = vld [vmem:[%s2 + $0x10] sm:$0x3f]
  %vm384 = vcmask 154624
  %v386 = vsel %vm384, %v371, 0
  %vm388 = vcmask 1042432
  %v390 = vsel %vm388, %v378, 0
  %v393 = vsel %vm388, %v379, 0
  %v396 = vsel %vm388, %v380, 0
  %398 = vmatprep.subr.mxu0 0.0
  %399 = vmatpush1.msra.mxu0 0.0
  %400 = vmatprep.subr.mxu0 0.0
  %401 = vmatpush1.msra.mxu0 0.0
  %402 = vmatprep.subr.mxu0 0.0
  %403 = vmatpush1.msra.mxu0 0.0
  %404 = vmatprep.subr.mxu0 0.0
  %405 = vmatpush1.msra.mxu0 0.0
  %406 = vmatprep.subr.mxu0 0.0
  %407 = vmatpush1.msra.mxu0 0.0
  %408 = vmatprep.subr.mxu0 0.0
  %409 = vmatpush1.msra.mxu0 0.0
  %410 = vmatprep.subr.mxu0 0.0
  %411 = vmatpush1.msra.mxu0 0.0
  %412 = vmatprep.subr.mxu0 0.0
  %413 = vmatpush1.msra.mxu0 0.0
  %414 = vmatprep.subr.mxu0 0.0
  %415 = vmatpush1.msra.mxu0 0.0
  %416 = vmatprep.subr.mxu0 0.0
  %417 = vmatpush1.msra.mxu0 0.0
  %418 = vmatprep.subr.mxu0 0.0
  %419 = vmatpush1.msra.mxu0 0.0
  %420 = vmatprep.subr.mxu0 0.0
  %421 = vmatpush1.msra.mxu0 0.0
  %422 = vmatprep.subr.mxu0 0.0
  %423 = vmatpush1.msra.mxu0 0.0
  %424 = vmatprep.subr.mxu0 %v393
  %425 = vmatpush1.msra.mxu0 %v390
  %426 = vmatprep.subr.mxu0 %v376
  %427 = vmatpush1.msra.mxu0 %v375
  %428 = vmatprep.subr.mxu0 %v373
  %429 = vmatpush1.msra.mxu0 %v372
  %430 = vmatprep.subr.mxu0 0.0
  %431 = vmatpush2.msra.mxu0 0.0
  %432 = vmatprep.subr.mxu0 0.0
  %433 = vmatpush2.msra.mxu0 0.0
  %434 = vmatprep.subr.mxu0 0.0
  %435 = vmatpush2.msra.mxu0 0.0
  %436 = vmatprep.subr.mxu0 0.0
  %437 = vmatpush2.msra.mxu0 0.0
  %438 = vmatprep.subr.mxu0 0.0
  %439 = vmatpush2.msra.mxu0 0.0
  %440 = vmatprep.subr.mxu0 0.0
  %441 = vmatpush2.msra.mxu0 0.0
  %442 = vmatprep.subr.mxu0 0.0
  %443 = vmatpush2.msra.mxu0 0.0
  %444 = vmatprep.subr.mxu0 0.0
  %445 = vmatpush2.msra.mxu0 0.0
  %446 = vmatprep.subr.mxu0 0.0
  %447 = vmatpush2.msra.mxu0 0.0
  %448 = vmatprep.subr.mxu0 0.0
  %449 = vmatpush2.msra.mxu0 0.0
  %450 = vmatprep.subr.mxu0 0.0
  %451 = vmatpush2.msra.mxu0 0.0
  %452 = vmatprep.subr.mxu0 0.0
  %453 = vmatpush2.msra.mxu0 0.0
  %454 = vmatprep.subr.mxu0 0.0
  %455 = vmatpush2.msra.mxu0 0.0
  %456 = vmatprep.subr.mxu0 0.0
  %457 = vmatpush2.msra.mxu0 0.0
  %458 = vmatprep.subr.mxu0 0.0
  %459 = vmatpush2.msra.mxu0 0.0
  %460 = vmatprep.subr.mxu0 0.0
  %461 = vmatpush2.msra.mxu0 0.0
  %462 = vmatprep.mubr.f32.mxu0 0.0
  %463 = vmatmul.mubr.f32.gmra.mxu0 %v386
  %v464 = vpop.f32.mrf.mxu0
  %v465 = vadd.f32 %v381, %v464
  %v466 = vpop.f32.mrf.mxu0
  %v467 = vadd.f32 %v382, %v466
  %468 = vdwg.mxu0
  %469 = vmatprep.subr.mxu0 0.0
  %470 = vmatpush1.msra.mxu0 0.0
  %471 = vmatprep.subr.mxu0 0.0
  %472 = vmatpush1.msra.mxu0 0.0
  %473 = vmatprep.subr.mxu0 0.0
  %474 = vmatpush1.msra.mxu0 0.0
  %475 = vmatprep.subr.mxu0 0.0
  %476 = vmatpush1.msra.mxu0 0.0
  %477 = vmatprep.subr.mxu0 0.0
  %478 = vmatpush1.msra.mxu0 0.0
  %479 = vmatprep.subr.mxu0 0.0
  %480 = vmatpush1.msra.mxu0 0.0
  %481 = vmatprep.subr.mxu0 0.0
  %482 = vmatpush1.msra.mxu0 0.0
  %483 = vmatprep.subr.mxu0 0.0
  %484 = vmatpush1.msra.mxu0 0.0
  %485 = vmatprep.subr.mxu0 0.0
  %486 = vmatpush1.msra.mxu0 0.0
  %487 = vmatprep.subr.mxu0 0.0
  %488 = vmatpush1.msra.mxu0 0.0
  %489 = vmatprep.subr.mxu0 0.0
  %490 = vmatpush1.msra.mxu0 0.0
  %491 = vmatprep.subr.mxu0 0.0
  %492 = vmatpush1.msra.mxu0 0.0
  %493 = vmatprep.subr.mxu0 0.0
  %494 = vmatpush1.msra.mxu0 0.0
  %495 = vmatprep.subr.mxu0 0.0
  %496 = vmatpush1.msra.mxu0 %v396
  %497 = vmatprep.subr.mxu0 0.0
  %498 = vmatpush1.msra.mxu0 %v377
  %499 = vmatprep.subr.mxu0 0.0
  %500 = vmatpush1.msra.mxu0 %v374
  %501 = vmatprep.subr.mxu0 0.0
  %502 = vmatpush2.msra.mxu0 0.0
  %503 = vmatprep.subr.mxu0 0.0
  %504 = vmatpush2.msra.mxu0 0.0
  %505 = vmatprep.subr.mxu0 0.0
  %506 = vmatpush2.msra.mxu0 0.0
  %507 = vmatprep.subr.mxu0 0.0
  %508 = vmatpush2.msra.mxu0 0.0
  %509 = vmatprep.subr.mxu0 0.0
  %510 = vmatpush2.msra.mxu0 0.0
  %511 = vmatprep.subr.mxu0 0.0
  %512 = vmatpush2.msra.mxu0 0.0
  %513 = vmatprep.subr.mxu0 0.0
  %514 = vmatpush2.msra.mxu0 0.0
  %515 = vmatprep.subr.mxu0 0.0
  %516 = vmatpush2.msra.mxu0 0.0
  %517 = vmatprep.subr.mxu0 0.0
  %518 = vmatpush2.msra.mxu0 0.0
  %519 = vmatprep.subr.mxu0 0.0
  %520 = vmatpush2.msra.mxu0 0.0
  %521 = vmatprep.subr.mxu0 0.0
  %522 = vmatpush2.msra.mxu0 0.0
  %523 = vmatprep.subr.mxu0 0.0
  %524 = vmatpush2.msra.mxu0 0.0
  %525 = vmatprep.subr.mxu0 0.0
  %526 = vmatpush2.msra.mxu0 0.0
  %527 = vmatprep.subr.mxu0 0.0
  %528 = vmatpush2.msra.mxu0 0.0
  %529 = vmatprep.subr.mxu0 0.0
  %530 = vmatpush2.msra.mxu0 0.0
  %531 = vmatprep.subr.mxu0 0.0
  %532 = vmatpush2.msra.mxu0 0.0
  %533 = vmatprep.mubr.f32.mxu0 0.0
  %534 = vmatmul.mubr.f32.gmra.mxu0 %v386
  %v535 = vpop.f32.mrf.mxu0
  %v536 = vadd.f32 %v383, %v535
  %v537 = vpop.f32.mrf.mxu0
  %538 = vdwg.mxu0
  %v539 = vld [vmem:[%s3] sm:$0x3f]
  %v540 = vld [vmem:[%s3 + $0x8] sm:$0x3f]
  %v541 = vld [vmem:[%s3 + $0x10] sm:$0x3f]
  %v542 = vadd.f32 %v465, %v539
  %v543 = vadd.f32 %v467, %v540
  %v544 = vadd.f32 %v536, %v541
  %545 = vst [vmem:[%s4] sm:$0x3f] %v542
  %546 = vst [vmem:[%s4 + $0x8] sm:$0x3f] %v543
  %vm547 = vcmask 553984
  %548 = vst.msk [vmem:[%s4 + $0x10] sm:$0x3f] %vm547, %v544
  // Predicated region
  $region18: #{model_forward.1} parent=0 // pred_check
    _
  $region19: #{model_forward.1} parent=0 // pred_check_branch
    %550 = sbr.rel (0) target = $region21
  $region20: #{model_forward.1} parent=0 // pred_region
    _
  $region21: #{model_forward.1} parent=0 // pred_fallthru
    _
  // Predicated region
  $region22: #{model_forward.1} parent=0 // pred_check
    _
  $region23: #{model_forward.1} parent=0 // pred_check_branch
    %552 = sbr.rel (0) target = $region25
  $region24: #{model_forward.1} parent=0 // pred_region
    _
  $region25: #{model_forward.1} parent=0 // pred_fallthru
    _

</llo_original>
